<compile_context>
chip_gen: v5e
topology: v5e:2x2
jax: 0.10.0
libtpu: 0.0.40
codegen_flags: <defaults>
</compile_context>

<pallas_src>
import jax
import jax.numpy as jnp
from jax.experimental import pallas as pl
from jax.experimental.pallas import tpu as pltpu


# ----------------------------------------------------------------------------
# Default forward: identity, kernel elided entirely (zero FLOPs, zero traffic).
# ----------------------------------------------------------------------------
def basenet_forward(x: jnp.ndarray) -> jnp.ndarray:
    return x


# ----------------------------------------------------------------------------
# Materializing path #1 (primary): whole-array HBM -> HBM DMA copy.
# Pure DMA (read + write) is the hardware floor for a zero-compute copy:
# no VMEM staging, no reshape/pad in the wrapper, works for any shape/dtype.
# ----------------------------------------------------------------------------
def _dma_copy_kernel(x_hbm_ref, o_hbm_ref, sem):
    cp = pltpu.make_async_copy(x_hbm_ref, o_hbm_ref, sem)
    cp.start()
    cp.wait()


def basenet_forward_pallas_dma(x: jnp.ndarray) -> jnp.ndarray:
    nbytes = x.size * jnp.dtype(x.dtype).itemsize
    # NOTE: if the caller does not need a distinct output buffer, passing
    # input_output_aliases={0: 0} would make this a zero-traffic no-op; we
    # keep a fresh output buffer so the input stays valid.
    return pl.pallas_call(
        _dma_copy_kernel,
        out_shape=jax.ShapeDtypeStruct(x.shape, x.dtype),
        in_specs=[pl.BlockSpec(memory_space=pl.ANY)],
        out_specs=pl.BlockSpec(memory_space=pl.ANY),
        scratch_shapes=[pltpu.SemaphoreType.DMA],
        cost_estimate=pl.CostEstimate(
            flops=0, transcendentals=0, bytes_accessed=2 * nbytes),
    )(x)


# ----------------------------------------------------------------------------
# Materializing path #2 (secondary): tiled, pipelined VMEM copy.
# ----------------------------------------------------------------------------
def _tiled_copy_kernel(x_ref, o_ref):
    # Lane-dense elementwise pass-through on the current VMEM tile.
    o_ref[...] = x_ref[...]


def _round_up(a: int, b: int) -> int:
    return ((a + b - 1) // b) * b


def _round_down(a: int, b: int) -> int:
    return (a // b) * b


_LANE_CANDIDATES = (8192, 4096, 2048, 1024, 512, 256, 128)


def _pick_tile_budget():
    """Per-generation (tile_bytes, vmem_limit_bytes) from the perf review."""
    try:
        kind = jax.devices()[0].device_kind.lower()
    except Exception:
        kind = ""
    if ("v5 lite" in kind) or ("v5e" in kind) or ("v5lite" in kind):
        # v5e: keep 2-in + 2-out double-buffers well inside scoped VMEM.
        return 3 << 20, 24 << 20
    # v6e / v7x: ~4 MiB tiles amortize the ~0.35 us/step overhead to <10%.
    return 4 << 20, 32 << 20


def basenet_forward_pallas_tiled(x: jnp.ndarray) -> jnp.ndarray:
    orig_shape = x.shape
    dtype = x.dtype
    dtype_bytes = jnp.dtype(dtype).itemsize
    total = int(x.size)
    sublane_pack = {4: 8, 2: 16, 1: 32}.get(dtype_bytes, 8)
    target_tile_bytes, vmem_limit = _pick_tile_budget()

    # Widest lane slab (multiple of 128) that divides the element count ->
    # unmasked wide vst, no HBM-side padding copy, free bitcast reshape.
    lanes = None
    for cand in _LANE_CANDIDATES:
        if total % cand == 0:
            lanes = cand
            break

    if lanes is None:
        # Ragged fallback (total not a multiple of 128): minimal zero-pad.
        # TODO(synk): handle the ragged tail in-kernel with a masked store
        # instead of this HBM-side pad/slice round-trip.
        lanes = 128
        rows = _round_up(-(-total // lanes), sublane_pack)
        padded_total = rows * lanes
        x2d = jnp.pad(x.reshape(-1), (0, padded_total - total)).reshape(rows, lanes)
        needs_slice = True
    else:
        rows = total // lanes
        x2d = x.reshape(rows, lanes)   # same element count: free reshape
        padded_total = total
        needs_slice = False

    # Row tile: largest sublane-aligned exact divisor of `rows` under the
    # per-generation byte target (no partial edge blocks).
    if rows % sublane_pack != 0 or rows <= sublane_pack:
        tr = rows                      # block dim == full array dim is legal
    else:
        tr_cap = max(sublane_pack,
                     _round_down(target_tile_bytes // (lanes * dtype_bytes),
                                 sublane_pack))
        tr_cap = min(tr_cap, rows)
        tr = sublane_pack
        for cand in range(tr_cap, sublane_pack - 1, -sublane_pack):
            if rows % cand == 0:
                tr = cand
                break

    grid = (rows // tr,)

    out2d = pl.pallas_call(
        _tiled_copy_kernel,
        out_shape=jax.ShapeDtypeStruct((rows, lanes), dtype),
        grid_spec=pltpu.PrefetchScalarGridSpec(
            num_scalar_prefetch=0,
            grid=grid,
            in_specs=[pl.BlockSpec((tr, lanes), lambda i: (i, 0))],
            out_specs=pl.BlockSpec((tr, lanes), lambda i: (i, 0)),
        ),
        compiler_params=pltpu.CompilerParams(
            dimension_semantics=("parallel",),   # v7x megacore row sharding
            vmem_limit_bytes=vmem_limit,
        ),
        cost_estimate=pl.CostEstimate(
            flops=0,
            transcendentals=0,
            bytes_accessed=2 * padded_total * dtype_bytes,
        ),
    )(x2d)

    if needs_slice:
        return out2d.reshape(-1)[:total].reshape(orig_shape)
    return out2d.reshape(orig_shape)


# ----------------------------------------------------------------------------
# Module wrapper
# ----------------------------------------------------------------------------
class BaseNetPallas:
    """JAX/Pallas analogue of the PyTorch BaseNet base class."""

    def __init__(self, name=None):
        self.name = name
        self.params = {}  # BaseNet.__init__ registers no parameters.

    def paraminit(self, key=None, std=0.1):
        # No parameters to initialize for the base class; kept for parity.
        new_params = {}
        if key is None:
            key = jax.random.PRNGKey(0)
        for i, (k, v) in enumerate(self.params.items()):
            subkey = jax.random.fold_in(key, i)
            new_params[k] = std * jax.random.normal(subkey, v.shape, v.dtype)
        self.params = new_params

    def __call__(self, x: jnp.ndarray, materialize: bool = False,
                 staged: bool = False) -> jnp.ndarray:
        if materialize:
            if staged:
                return basenet_forward_pallas_tiled(x)
            return basenet_forward_pallas_dma(x)
        return basenet_forward(x)


if __name__ == "__main__":
    key = jax.random.PRNGKey(0)
    # NCHW input, small shapes: batch=2, channels=4, spatial=16x16
    x = jax.random.normal(key, (2, 4, 16, 16), dtype=jnp.float32)

    net = BaseNetPallas(name="basenet")
    net.paraminit()  # no-op: base class has no parameters

    # Default forward: kernel elided entirely (zero-FLOP identity).
    y_fast = jax.block_until_ready(net(x))

    # Materializing copy #1: whole-array HBM->HBM DMA (hardware floor).
    y_dma = jax.block_until_ready(net(x, materialize=True))

    # Materializing copy #2: tiled, pipelined VMEM copy kernel.
    y_tiled = jax.block_until_ready(net(x, materialize=True, staged=True))

    assert y_fast.shape == x.shape, (y_fast.shape, x.shape)
    assert y_dma.shape == x.shape and y_dma.dtype == x.dtype
    assert y_tiled.shape == x.shape and y_tiled.dtype == x.dtype
    assert bool(jnp.array_equal(y_fast, x)), "elided identity mismatch"
    assert bool(jnp.array_equal(y_dma, x)), "dma identity copy mismatch"
    assert bool(jnp.array_equal(y_tiled, x)), "tiled identity copy mismatch"

    print("KERNEL_OK")
</pallas_src>

<mosaic_0001>
module attributes {stable_mosaic.version = 11 : i64} {
  func.func @_dma_copy_kernel(%arg0: memref<2x4x16x16xf32, #tpu.memory_space<any>>, %arg1: memref<2x4x16x16xf32, #tpu.memory_space<any>>, %arg2: memref<!tpu.dma_semaphore, #tpu.memory_space<semaphore_mem>>) attributes {dimension_semantics = [], scalar_prefetch = 0 : i64, scratch_operands = 1 : i64, tpu.core_type = #tpu.core_type<tc>} {
    tpu.enqueue_dma source(%arg0 : memref<2x4x16x16xf32, #tpu.memory_space<any>>) target(%arg1 : memref<2x4x16x16xf32, #tpu.memory_space<any>>) target_semaphore(%arg2 : memref<!tpu.dma_semaphore, #tpu.memory_space<semaphore_mem>>)
    tpu.wait_dma2 semaphore(%arg2 : memref<!tpu.dma_semaphore, #tpu.memory_space<semaphore_mem>>) src(%arg0 : memref<2x4x16x16xf32, #tpu.memory_space<any>>) dst(%arg1 : memref<2x4x16x16xf32, #tpu.memory_space<any>>)
    return
  }
}

</mosaic_0001>

<llo_original>
// kernel: tpu_custom_call.1
$region0: #{tpu_custom_call.1}
  #allocation0 [shape = 'u32[]', space=smem, size = 0x4, offset = 0x4, fixed_abs, tag = 'smem constant byte address 0x4 - core index']
  #allocation1 [shape = 'u32[72,128]{1,0:T(1,128)}', space=vmem, size = 0x9000, scoped, tag = 'internal scratch']
  #allocation2 [shape = 's32[1]{0}', space=sflag, size = 0x4, scoped, tag = 'scratch operand']
  #allocation3 [shape = 's32[]', space=sflag, size = 0x4, offset = 0, fixed_abs, tag = 'sflag constant byte address 0x0 - dummy sync flag']
  #allocation4 [shape = 'u32[0]{0}', space=smem, size = 0, offset = 0, fixed_abs, tag = 'smem constant byte address 0x0 - null']
  %s0 = inlined_call_operand.hbm [shape: f32[2,4,16,16], index: 0, kind: input, shape index: {}]
  %s1 = inlined_call_operand.hbm [shape: f32[2,4,16,16], index: 1, kind: output, shape index: {}]
  %s2 = sld [smem:[#allocation0]]
  $region2: #{tpu_custom_call.1} parent=0
    _
  %s4 = ssub.s32 1, %s2
  %s5 = scalar_select 0, %s4, %s2
  %s7 = sshll.u32 1, 14
  %s8 = sxor.u32 4294967295, %s7
  %s10 = sshll.u32 %s0, 4
  %s11 = int_to_ptr.hbm [resolvable:$true] %s10
  %s12 = sshll.u32 %s1, 4
  %s13 = int_to_ptr.hbm [resolvable:$true] %s12
  %16 = dma.general %s11, 2048, %s13, [#allocation2], [#allocation3], [#allocation4], 0, 0
  %s17 = smul.u32 2, 4
  %s18 = smul.u32 %s17, 16
  %s19 = smul.u32 %s18, 1
  %s20 = sshll.u32 %s19, 4
  %21 = dma.done [#allocation2], %s20
  %22 = vsyncmov [#allocation2]
  %s23 = vpop.sfrf %22
  %p24 = scmp.eq.s32.totalorder %s23, 0
  %p25 = pneg %p24
  %27 = shalt.err (%p25)

</llo_original>
